<compile_context>
chip_gen: v6e
topology: v6e:2x2x1
jax: 0.10.0
libtpu: 0.0.40
codegen_flags: <defaults>
</compile_context>

<pallas_src>
import functools

import jax
import jax.numpy as jnp
from jax.experimental import pallas as pl
from jax.experimental.pallas import tpu as pltpu


def _sparse_lsr_kernel(yp_ref, yt_ref, out_ref, *, smoothing: float,
                       n_total: int, tile_n: int):
    i = pl.program_id(0)

    # Load tile and upcast to f32 inside the kernel (input may be bf16).
    yp = yp_ref[...].astype(jnp.float32)                       # (TILE_N, C)
    tn, c = yp.shape
    num_classes = jnp.float32(c)

    # --- numerically stable logsumexp over the class (lane) axis ---
    row_max = jnp.max(yp, axis=1, keepdims=True)               # (TILE_N, 1)
    shifted = yp - row_max                                     # (TILE_N, C)
    lse = jnp.log(jnp.sum(jnp.exp(shifted), axis=1, keepdims=True))  # (TILE_N, 1)

    # --- fused gather of the target class: one-hot select on `shifted`, then
    #     lane reduction; log_prob = shifted[target] - lse (no log_prob_all) ---
    tgt = yt_ref[...]                                          # (TILE_N, 1) int32
    col = jax.lax.broadcasted_iota(jnp.int32, (tn, c), 1)      # (TILE_N, C)
    shifted_tgt = jnp.sum(jnp.where(col == tgt, shifted, jnp.float32(0.0)),
                          axis=1, keepdims=True)               # (TILE_N, 1)
    log_prob = shifted_tgt - lse                               # (TILE_N, 1)

    # --- SparseLSR loss (per-row math only; the one (TILE_N, C) exp above is
    #     the sole per-element transcendental) ---
    coef_main = jnp.float32(1.0 - smoothing + smoothing / c)
    coef_rest = jnp.float32(smoothing * (c - 1) / c)
    rest = jnp.maximum(jnp.float32(1.0) - jnp.exp(log_prob), jnp.float32(1e-7)) / (
        num_classes - jnp.float32(1.0))
    loss = -coef_main * log_prob + coef_rest * jnp.log(rest)   # (TILE_N, 1)

    # --- mask padded rows of the (possibly ragged) last tile ---
    row = jax.lax.broadcasted_iota(jnp.int32, (tn, 1), 0) + i * tile_n
    loss = jnp.where(row < n_total, loss, jnp.float32(0.0))

    tile_sum = jnp.sum(loss, keepdims=True).reshape(1, 1)      # (1, 1)

    # --- accumulate into the resident (1,1) output block; mean on last step ---
    @pl.when(i == 0)
    def _():
        out_ref[...] = jnp.zeros_like(out_ref)

    out_ref[...] += tile_sum

    @pl.when(i == pl.num_programs(0) - 1)
    def _():
        out_ref[...] = out_ref[...] / jnp.float32(n_total)


def _pick_tile_n(n: int, c: int, itemsize: int) -> int:
    # Keep one pipeline buffer around <= 4 MiB so 2x double-buffering fits the
    # default scoped VMEM on every generation (v5e 16 MiB .. v7x 32 MiB).
    budget_bytes = 4 * 1024 * 1024
    t = budget_bytes // max(c * itemsize, 1)
    t = max(8, min(512, int(t)))
    t = (t // 8) * 8                 # sublane alignment for the block shape
    if t >= n:
        return n                     # full-extent block (always legal)
    return t


def sparse_lsr_loss(y_pred: jax.Array, y_target: jax.Array,
                    smoothing: float = 0.0, tile_n: int | None = None) -> jax.Array:
    """y_pred: (N, C) float (f32/bf16); y_target: (N,) int. Returns scalar mean loss."""
    n, c = y_pred.shape
    y_target_2d = y_target.astype(jnp.int32).reshape(n, 1)

    if tile_n is None:
        tile_n = _pick_tile_n(n, c, jnp.dtype(y_pred.dtype).itemsize)
    tile_n = min(tile_n, n)
    if tile_n < n:
        tile_n = max(8, (tile_n // 8) * 8)
    grid = (pl.cdiv(n, tile_n),)

    kernel = functools.partial(_sparse_lsr_kernel, smoothing=float(smoothing),
                               n_total=n, tile_n=tile_n)
    out = pl.pallas_call(
        kernel,
        out_shape=jax.ShapeDtypeStruct((1, 1), jnp.float32),
        grid=grid,
        in_specs=[
            pl.BlockSpec((tile_n, c), lambda i: (i, 0)),   # logits tile (native dtype)
            pl.BlockSpec((tile_n, 1), lambda i: (i, 0)),   # target tile
        ],
        out_specs=pl.BlockSpec((1, 1), lambda i: (0, 0)),  # resident accumulator
        compiler_params=pltpu.CompilerParams(
            dimension_semantics=("arbitrary",),            # reduction axis
            vmem_limit_bytes=32 * 1024 * 1024,
        ),
    )(y_pred, y_target_2d)
    return out[0, 0]


def _reference(y_pred, y_target, smoothing=0.0):
    """Pure-JAX reference mirroring the PyTorch module."""
    c = y_pred.shape[1]
    logits = y_pred.astype(jnp.float32)
    logp_all = jax.nn.log_softmax(logits, axis=1)
    logp = jnp.take_along_axis(logp_all, y_target[:, None], axis=1)
    loss = (-(1 - smoothing + smoothing / c) * logp
            + smoothing * (c - 1) / c
            * jnp.log(jnp.maximum(1 - jnp.exp(logp), 1e-7) / (c - 1)))
    return loss.mean()


if __name__ == "__main__":
    key = jax.random.PRNGKey(0)
    k1, k2, k3, k4 = jax.random.split(key, 4)

    # Small shapes consistent with the module: batch=8, classes=32.
    N, C = 8, 32
    y_pred = jax.random.normal(k1, (N, C), dtype=jnp.float32)
    y_target = jax.random.randint(k2, (N,), 0, C, dtype=jnp.int32)

    smoothing = 0.1  # exercise both loss terms; module default is 0.0
    loss = sparse_lsr_loss(y_pred, y_target, smoothing=smoothing)
    jax.block_until_ready(loss)
    ref = _reference(y_pred, y_target, smoothing=smoothing)
    assert jnp.allclose(loss, ref, atol=1e-5, rtol=1e-5), (loss, ref)

    # smoothing=0.0 (plain sparse NLL)
    loss0 = sparse_lsr_loss(y_pred, y_target, smoothing=0.0)
    jax.block_until_ready(loss0)
    ref0 = _reference(y_pred, y_target, smoothing=0.0)
    assert jnp.allclose(loss0, ref0, atol=1e-5, rtol=1e-5), (loss0, ref0)

    # Multi-tile + ragged batch: exercises the resident accumulator and the
    # padded-row mask (N=20 with TILE_N=8 -> 3 grid steps, last tile ragged).
    N2, C2 = 20, 32
    y_pred2 = jax.random.normal(k3, (N2, C2), dtype=jnp.float32)
    y_target2 = jax.random.randint(k4, (N2,), 0, C2, dtype=jnp.int32)
    loss2 = sparse_lsr_loss(y_pred2, y_target2, smoothing=0.1, tile_n=8)
    jax.block_until_ready(loss2)
    ref2 = _reference(y_pred2, y_target2, smoothing=0.1)
    assert jnp.allclose(loss2, ref2, atol=1e-5, rtol=1e-5), (loss2, ref2)

    # bf16 input path: no wrapper-side cast, upcast happens inside the kernel.
    y_pred_bf16 = y_pred2.astype(jnp.bfloat16)
    loss_bf16 = sparse_lsr_loss(y_pred_bf16, y_target2, smoothing=0.1, tile_n=8)
    jax.block_until_ready(loss_bf16)
    ref_bf16 = _reference(y_pred_bf16, y_target2, smoothing=0.1)
    assert jnp.allclose(loss_bf16, ref_bf16, atol=1e-4, rtol=1e-4), (loss_bf16, ref_bf16)

    print("KERNEL_OK")
</pallas_src>

<mosaic_0001>
module attributes {stable_mosaic.version = 11 : i64} {
  func.func @_sparse_lsr_kernel(%arg0: i32, %arg1: memref<8x32xf32, #tpu.memory_space<vmem>>, %arg2: memref<8x1xi32, #tpu.memory_space<vmem>>, %arg3: memref<1x1xf32, #tpu.memory_space<vmem>>) attributes {dimension_semantics = [#tpu.dimension_semantics<arbitrary>], iteration_bounds = array<i64: 1>, scalar_prefetch = 0 : i64, scratch_operands = 0 : i64, tpu.core_type = #tpu.core_type<tc>, window_params = [{transform_indices = @transform_0, window_bounds = array<i64: 8, 32>}, {transform_indices = @transform_1, window_bounds = array<i64: 8, 1>}, {pipeline_mode = #tpu.pipeline_mode<synchronous>, transform_indices = @transform_2, window_bounds = array<i64: 1, 1>}]} {
    %c0 = arith.constant 0 : index
    %c0_0 = arith.constant 0 : index
    %0 = vector.load %arg1[%c0, %c0_0] : memref<8x32xf32, #tpu.memory_space<vmem>>, vector<8x32xf32>
    %cst = arith.constant dense<0xFF800000> : vector<8xf32>
    %1 = vector.multi_reduction <maximumf>, %0, %cst [1] : vector<8x32xf32> to vector<8xf32>
    %2 = vector.shape_cast %1 : vector<8xf32> to vector<8x1xf32>
    %3 = vector.broadcast %2 : vector<8x1xf32> to vector<8x32xf32>
    %4 = arith.subf %0, %3 : vector<8x32xf32>
    %5 = math.exp %4 : vector<8x32xf32>
    %cst_1 = arith.constant dense<0.000000e+00> : vector<8xf32>
    %6 = vector.multi_reduction <add>, %5, %cst_1 [1] : vector<8x32xf32> to vector<8xf32>
    %7 = vector.shape_cast %6 : vector<8xf32> to vector<8x1xf32>
    %8 = math.log %7 : vector<8x1xf32>
    %c0_2 = arith.constant 0 : index
    %c0_3 = arith.constant 0 : index
    %9 = vector.load %arg2[%c0_2, %c0_3] : memref<8x1xi32, #tpu.memory_space<vmem>>, vector<8x1xi32>
    %10 = tpu.iota {dimensions = array<i32: 1>} : vector<8x32xi32>
    %11 = vector.broadcast %9 : vector<8x1xi32> to vector<8x32xi32>
    %12 = arith.cmpi eq, %10, %11 : vector<8x32xi32>
    %cst_4 = arith.constant 0.000000e+00 : f32
    %13 = vector.broadcast %cst_4 : f32 to vector<8x32xf32>
    %14 = arith.select %12, %4, %13 : vector<8x32xi1>, vector<8x32xf32>
    %cst_5 = arith.constant dense<0.000000e+00> : vector<8xf32>
    %15 = vector.multi_reduction <add>, %14, %cst_5 [1] : vector<8x32xf32> to vector<8xf32>
    %16 = vector.shape_cast %15 : vector<8xf32> to vector<8x1xf32>
    %17 = arith.subf %16, %8 : vector<8x1xf32>
    %18 = math.exp %17 : vector<8x1xf32>
    %cst_6 = arith.constant 1.000000e+00 : f32
    %19 = vector.broadcast %cst_6 : f32 to vector<8x1xf32>
    %20 = arith.subf %19, %18 : vector<8x1xf32>
    %cst_7 = arith.constant 1.000000e-07 : f32
    %21 = vector.broadcast %cst_7 : f32 to vector<8x1xf32>
    %22 = arith.maximumf %20, %21 : vector<8x1xf32>
    %cst_8 = arith.constant 3.200000e+01 : f32
    %cst_9 = arith.constant 1.000000e+00 : f32
    %23 = arith.subf %cst_8, %cst_9 : f32
    %24 = vector.broadcast %23 : f32 to vector<8x1xf32>
    %25 = arith.divf %22, %24 : vector<8x1xf32>
    %cst_10 = arith.constant 0.000000e+00 : f32
    %cst_11 = arith.constant 0.903124988 : f32
    %26 = arith.subf %cst_10, %cst_11 : f32
    %27 = vector.broadcast %26 : f32 to vector<8x1xf32>
    %28 = arith.mulf %27, %17 : vector<8x1xf32>
    %29 = math.log %25 : vector<8x1xf32>
    %cst_12 = arith.constant 0.096874997 : f32
    %30 = vector.broadcast %cst_12 : f32 to vector<8x1xf32>
    %31 = arith.mulf %30, %29 : vector<8x1xf32>
    %32 = arith.addf %28, %31 : vector<8x1xf32>
    %33 = tpu.iota {dimensions = array<i32: 0>} : vector<8x1xi32>
    %c8_i32 = arith.constant 8 : i32
    %34 = arith.muli %arg0, %c8_i32 : i32
    %35 = vector.broadcast %34 : i32 to vector<8x1xi32>
    %36 = arith.addi %33, %35 : vector<8x1xi32>
    %c8_i32_13 = arith.constant 8 : i32
    %37 = vector.broadcast %c8_i32_13 : i32 to vector<8x1xi32>
    %38 = arith.cmpi slt, %36, %37 : vector<8x1xi32>
    %cst_14 = arith.constant 0.000000e+00 : f32
    %39 = vector.broadcast %cst_14 : f32 to vector<8x1xf32>
    %40 = arith.select %38, %32, %39 : vector<8x1xi1>, vector<8x1xf32>
    %41 = vector.shape_cast %40 : vector<8x1xf32> to vector<1x8x1xf32>
    %cst_15 = arith.constant dense<0.000000e+00> : vector<1xf32>
    %42 = vector.multi_reduction <add>, %41, %cst_15 [1, 2] : vector<1x8x1xf32> to vector<1xf32>
    %43 = vector.shape_cast %42 : vector<1xf32> to vector<1x1x1xf32>
    %44 = vector.extract %43[0, 0, 0] : f32 from vector<1x1x1xf32>
    %45 = vector.broadcast %44 : f32 to vector<1x1xf32>
    %c0_i32 = arith.constant 0 : i32
    %46 = arith.cmpi eq, %arg0, %c0_i32 : i32
    %47 = arith.extui %46 : i1 to i32
    %c0_i32_16 = arith.constant 0 : i32
    %48 = arith.cmpi ne, %47, %c0_i32_16 : i32
    scf.if %48 {
      %cst_23 = arith.constant 0.000000e+00 : f32
      %55 = vector.broadcast %cst_23 : f32 to vector<1x1xf32>
      %c0_24 = arith.constant 0 : index
      %c0_25 = arith.constant 0 : index
      %56 = vector.load %arg3[%c0_24, %c0_25] : memref<1x1xf32, #tpu.memory_space<vmem>>, vector<1x1xf32>
      tpu.vector_store %arg3[%c0_24, %c0_25], %55 {strides = array<i32>} : memref<1x1xf32, #tpu.memory_space<vmem>>, vector<1x1xf32>,
    } else {
    }
    %c0_17 = arith.constant 0 : index
    %c0_18 = arith.constant 0 : index
    %49 = vector.load %arg3[%c0_17, %c0_18] : memref<1x1xf32, #tpu.memory_space<vmem>>, vector<1x1xf32>
    %50 = arith.addf %49, %45 : vector<1x1xf32>
    %c0_19 = arith.constant 0 : index
    %c0_20 = arith.constant 0 : index
    %51 = vector.load %arg3[%c0_19, %c0_20] : memref<1x1xf32, #tpu.memory_space<vmem>>, vector<1x1xf32>
    tpu.vector_store %arg3[%c0_19, %c0_20], %50 {strides = array<i32>} : memref<1x1xf32, #tpu.memory_space<vmem>>, vector<1x1xf32>,
    %c0_i32_21 = arith.constant 0 : i32
    %52 = arith.cmpi eq, %arg0, %c0_i32_21 : i32
    %53 = arith.extui %52 : i1 to i32
    %c0_i32_22 = arith.constant 0 : i32
    %54 = arith.cmpi ne, %53, %c0_i32_22 : i32
    scf.if %54 {
      %c0_23 = arith.constant 0 : index
      %c0_24 = arith.constant 0 : index
      %55 = vector.load %arg3[%c0_23, %c0_24] : memref<1x1xf32, #tpu.memory_space<vmem>>, vector<1x1xf32>
      %cst_25 = arith.constant 8.000000e+00 : f32
      %56 = vector.broadcast %cst_25 : f32 to vector<1x1xf32>
      %57 = arith.divf %55, %56 : vector<1x1xf32>
      %c0_26 = arith.constant 0 : index
      %c0_27 = arith.constant 0 : index
      %58 = vector.load %arg3[%c0_26, %c0_27] : memref<1x1xf32, #tpu.memory_space<vmem>>, vector<1x1xf32>
      tpu.vector_store %arg3[%c0_26, %c0_27], %57 {strides = array<i32>} : memref<1x1xf32, #tpu.memory_space<vmem>>, vector<1x1xf32>,
    } else {
    }
    return
  }
  func.func @transform_0(%arg0: i32) -> (i32, i32) {
    %c0_i32 = arith.constant 0 : i32
    %c0_i32_0 = arith.constant 0 : i32
    return %arg0, %c0_i32 : i32, i32
  }
  func.func @transform_1(%arg0: i32) -> (i32, i32) {
    %c0_i32 = arith.constant 0 : i32
    %c0_i32_0 = arith.constant 0 : i32
    return %arg0, %c0_i32 : i32, i32
  }
  func.func @transform_2(%arg0: i32) -> (i32, i32) {
    %c0_i32 = arith.constant 0 : i32
    %c0_i32_0 = arith.constant 0 : i32
    %c0_i32_1 = arith.constant 0 : i32
    return %c0_i32, %c0_i32_0 : i32, i32
  }
}

</mosaic_0001>

<llo_original>
// kernel: tpu_custom_call.1
$region0: #{tpu_custom_call.1}
  #allocation0 [shape = 'u32[]', space=smem, size = 0x4, offset = 0x4, fixed_abs, tag = 'smem constant byte address 0x4 - core index']
  #allocation1 [shape = 'u32[144,128]{1,0:T(1,128)}', space=vmem, size = 0x12000, scoped, tag = 'internal scratch']
  %s0 = inlined_call_operand.vmem [shape: f32[8,32], index: 0, kind: input, shape index: {}]
  %s1 = inlined_call_operand.vmem [shape: s32[8,1], index: 1, kind: input, shape index: {}]
  %s2 = inlined_call_operand.hbm [shape: f32[1,1], index: 2, kind: output, shape index: {}]
  %s3 = sld [smem:[#allocation0]]
  $region26: #{tpu_custom_call.1} parent=0
    _
  %s5 = ssub.s32 1, %s3
  %s6 = scalar_select 0, %s5, %s3
  $region1: #{tpu_custom_call.1} parent=0
    #allocation2 [shape = 'u8[512]{0}', space=vmem, size = 0x400, scoped, tag = 'output window, operand 0, single buffered']
    #allocation3 [shape = 's32[1]{0}', space=sflag, size = 0x4, scoped, tag = 'scoped memory for tpu_custom_call.1']
    %7 = vsyncpa [#allocation3], 0
    // Predicated region
    $region2: #{tpu_custom_call.1} parent=1 // pred_check
      _
    $region3: #{tpu_custom_call.1} parent=1 // pred_check_branch
      %9 = sbr.rel (0) target = $region5
    $region4: #{tpu_custom_call.1} parent=1 // pred_region
      _
    $region5: #{tpu_custom_call.1} parent=1 // pred_fallthru
      _
    // Predicated region
    $region6: #{tpu_custom_call.1} parent=1 // pred_check
      _
    $region7: #{tpu_custom_call.1} parent=1 // pred_check_branch
      %11 = sbr.rel (0) target = $region9
    $region8: #{tpu_custom_call.1} parent=1 // pred_region
      _
    $region9: #{tpu_custom_call.1} parent=1 // pred_fallthru
      _
    %v12 = vld [vmem:[%s0] sm:$0xff]
    %vm13 = vcmask 261120
    %v14 = vsel %vm13, %v12, -inf
    %15 = vmax.xlane.f32.xlu0 %v14
    %v16 = vpop.xlane.xlu0 %15
    %v17 = vsub.f32 %v12, %v16
    %v18 = vmul.f32 %v17, 1.442695
    %v19 = vpow.pop %v18
    %v20 = vsel %vm13, %v19, 0.0
    %21 = vadd.xlane.f32.xlu0 %v20
    %v22 = vpop.xlane.xlu0 %21
    %v23 = vlog2.pop %v22
    %v24 = vmul.f32 %v23, 0.6931472
    %v25 = vld [vmem:[%s1] sm:$0xff]
    %v26 = vlaneseq
    %v27 = vand.u32 %v26, 127
    %28 = vset.pattern.permute.xlu0 0
    %29 = vperm.xlu0 %28, %v25
    %v30 = vpop.permute.xlu0 %29
    %vm31 = vcmp.eq.s32.totalorder %v27, %v30
    %v32 = vsel %vm31, %v17, 0.0
    %v33 = vsel %vm13, %v32, 0.0
    %34 = vadd.xlane.f32.xlu0 %v33
    %v35 = vpop.xlane.xlu0 %34
    %v36 = vsub.f32 %v35, %v24
    %v37 = vmul.f32 %v36, 1.442695
    %v38 = vpow.pop %v37
    %v39 = vsub.f32 1.0, %v38
    %v40 = vmax.f32 %v39, 1e-07
    %v41 = vrcp.pop 31.0
    %v42 = vmul.f32 %v40, %v41
    %v43 = vmul.f32 %v36, -0.903125
    %v44 = vlog2.pop %v42
    %v45 = vmul.f32 %v44, 0.6931472
    %v46 = vmul.f32 %v45, 0.096875
    %v47 = vadd.f32 %v43, %v46
    %v48 = vlaneseq
    %v49 = vshrl.u32 %v48, 7
    %s50 = smul.u32 0, 8
    %v51 = vstv %s50
    %v52 = vadd.s32 %v49, %v51
    %vm53 = vcmp.lt.s32.totalorder %v52, 8
    %v54 = vsel %vm53, %v47, 0.0
    %vm55 = vcmask 7168
    %v56 = vsel %vm55, %v54, 0.0
    %57 = vadd.xlane.f32.xlu0 %v56
    %v58 = vpop.xlane.xlu0 %57
    %v59 = vrot.slane %v58, 4
    %v60 = vadd.f32 %v58, %v59
    %v61 = vrot.slane %v60, 2
    %v62 = vadd.f32 %v60, %v61
    %v63 = vrot.slane %v62, 1
    %v64 = vadd.f32 %v62, %v63
    %s65 = vtos %v64
    %v66 = vstv %s65
    %p67 = scmp.eq.s32.totalorder 0, 0
    // Predicated region
    $region10: #{tpu_custom_call.1} parent=1 // pred_check
      %p68 = pneg %p67
    $region11: #{tpu_custom_call.1} parent=1 // pred_check_branch
      %70 = sbr.rel (%p68) target = $region13
    $region12: #{tpu_custom_call.1} parent=1 // pred_region
      %vm71 = vcmask 0
      %72 = vst.msk [vmem:[#allocation2] sm:$0x1] %vm71, 0.0
    $region13: #{tpu_custom_call.1} parent=1 // pred_fallthru
      _
    %v73 = vld [vmem:[#allocation2] sm:$0x1]
    %v74 = vadd.f32 %v73, %v66
    %vm75 = vcmask 0
    %76 = vst.msk [vmem:[#allocation2] sm:$0x1] %vm75, %v74
    // Predicated region
    $region14: #{tpu_custom_call.1} parent=1 // pred_check
      %p77 = pneg %p67
    $region15: #{tpu_custom_call.1} parent=1 // pred_check_branch
      %79 = sbr.rel (%p77) target = $region17
    $region16: #{tpu_custom_call.1} parent=1 // pred_region
      %v80 = vld [vmem:[#allocation2] sm:$0x1]
      %v81 = vrcp.pop 8.0
      %v82 = vmul.f32 %v80, %v81
      %83 = vst.msk [vmem:[#allocation2] sm:$0x1] %vm75, %v82
    $region17: #{tpu_custom_call.1} parent=1 // pred_fallthru
      _
    // Predicated region
    $region18: #{tpu_custom_call.1} parent=1 // pred_check
      _
    $region19: #{tpu_custom_call.1} parent=1 // pred_check_branch
      %85 = sbr.rel (0) target = $region21
    $region20: #{tpu_custom_call.1} parent=1 // pred_region
      %s87 = ssub.s32 16, 16
      %88 = vsyncadd [#allocation3], %s87
      %s90 = sshll.u32 [#allocation2], 4
      %s91 = int_to_ptr.vmem [resolvable:$true] %s90
      %93 = dma.vmem_to_hbm [thread:$0]  %s91, 16, %s2, [#allocation3]
    $region21: #{tpu_custom_call.1} parent=1 // pred_fallthru
      _
    // Predicated region
    $region22: #{tpu_custom_call.1} parent=1 // pred_check
      _
    $region23: #{tpu_custom_call.1} parent=1 // pred_check_branch
      %95 = sbr.rel (0) target = $region25
    $region24: #{tpu_custom_call.1} parent=1 // pred_region
      %96 = dma.done [#allocation3], 16
    $region25: #{tpu_custom_call.1} parent=1 // pred_fallthru
      _
    %97 = vsyncpa [#allocation3], 1

</llo_original>
